<compile_context>
chip_gen: v7x
topology: tpu7x:2x2x1
jax: 0.10.0
libtpu: 0.0.40
codegen_flags: <defaults>
</compile_context>

<pallas_src>
import functools
import math

import jax
import jax.numpy as jnp
from jax.experimental import pallas as pl
from jax.experimental.pallas import tpu as pltpu

LANE = 128


def _round_up(x, m):
    return ((x + m - 1) // m) * m


def _pad_last(x, target):
    d = x.shape[-1]
    if d == target:
        return x
    pad = [(0, 0)] * (x.ndim - 1) + [(0, target - d)]
    return jnp.pad(x, pad)


def _pad_rows(n):
    """Node-count padding: tile-friendly with modest zero-row overhead."""
    return _round_up(n, 128) if n <= 256 else _round_up(n, 256)


def _plan_tiles(n_pad, f_in_p, f_out_p, out_itemsize, budget=24 << 20):
    """Pick (tile_n, tile_k): large tiles, >= 2 row tiles when possible, and a
    double-buffered working set bounded by `budget` (v7x VMEM headroom)."""
    tile_n = 256 if (n_pad >= 512 and n_pad % 256 == 0) else min(128, n_pad)
    tile_k = 128
    for cand in (2048, 1024, 512, 256, 128):
        if n_pad % cand == 0:
            tile_k = cand
            break

    def working_set(tk):
        return (2 * tile_n * tk * 1              # A tiles (int8)
                + 2 * tk * f_in_p * 2            # neighbour h tiles (bf16)
                + 2 * tile_n * f_in_p * 2        # self h tiles (bf16)
                + 2 * 2 * f_in_p * f_out_p * 2   # W1, W2 (bf16)
                + tile_n * f_in_p * 4            # f32 accumulator scratch
                + 2 * tile_n * f_out_p * out_itemsize
                + 2 * (tile_n + 3 * f_out_p) * 4)

    while tile_k > 256 and working_set(tile_k) > budget:
        tile_k //= 2
    return tile_n, tile_k


def _sage_layer_kernel(a_ref, hk_ref, hself_ref, norm_ref,
                       w1_ref, w2_ref, b_ref, gamma_ref, beta_ref,
                       o_ref, acc_ref, *,
                       use_lynorm, use_act, eps, f_out_true):
    """One fused GraphSAGE layer.  grid = (row tile i, contraction tile k)."""
    k = pl.program_id(1)

    @pl.when(k == 0)
    def _():
        acc_ref[...] = jnp.zeros_like(acc_ref)

    # Partial aggregation: acc += A[i-tile, k-tile] @ h[k-tile].
    # A arrives as int8 (half the HBM bytes); the bf16 upcast is VPU filler
    # hidden under the A DMA.  f32 accumulation in VMEM scratch.
    acc_ref[...] += jnp.dot(a_ref[...].astype(jnp.bfloat16), hk_ref[...],
                            preferred_element_type=jnp.float32)

    @pl.when(k == pl.num_programs(1) - 1)
    def _():
        # normalise by 1 / in_degree (kept in f32; not folded into int8 A)
        ah = acc_ref[...] * norm_ref[...]                     # (tn, f_in_p) f32

        # concat(h, ah) @ W^T + b  ==  h @ W1 + ah @ W2 + b
        z = (jnp.dot(hself_ref[...], w1_ref[...],
                     preferred_element_type=jnp.float32)
             + jnp.dot(ah.astype(w2_ref.dtype), w2_ref[...],
                       preferred_element_type=jnp.float32)
             + b_ref[...])

        if use_lynorm:
            # Padded lanes of z are exactly 0 (W/b columns zero-padded), so
            # the mean needs no mask; only the centred term is masked.
            mu = jnp.sum(z, axis=-1, keepdims=True) * (1.0 / f_out_true)
            diff = z - mu
            if z.shape[-1] != f_out_true:
                lane = jax.lax.broadcasted_iota(jnp.int32, z.shape, 1)
                diff = jnp.where(lane < f_out_true, diff, 0.0)
            var = jnp.sum(diff * diff, axis=-1,
                          keepdims=True) * (1.0 / f_out_true)
            z = diff * jax.lax.rsqrt(var + eps)
            # gamma/beta are zero-padded -> padded lanes stay exactly 0
            z = z * gamma_ref[...] + beta_ref[...]

        if use_act:
            z = jnp.maximum(z, 0.0)

        o_ref[...] = z.astype(o_ref.dtype)


def sage_layer(a_i8, norm, h, w1, w2, b, gamma, beta, *,
               f_out_true, use_lynorm, use_act, out_dtype, eps=1e-5):
    """a_i8: (Np, Np) int8 0/1; h: (Np, f_in_p) bf16; w1/w2: (f_in_p, f_out_p)
    bf16; norm (Np, 1) / b, gamma, beta (1, f_out_p): f32.  Feature dims are
    zero-padded to multiples of 128 lanes."""
    n_pad = a_i8.shape[0]
    f_in_p = h.shape[1]
    f_out_p = w1.shape[1]
    out_isz = jnp.dtype(out_dtype).itemsize

    tile_n, tile_k = _plan_tiles(n_pad, f_in_p, f_out_p, out_isz)
    assert n_pad % tile_n == 0 and n_pad % tile_k == 0

    kernel = functools.partial(_sage_layer_kernel,
                               use_lynorm=use_lynorm, use_act=use_act,
                               eps=eps, f_out_true=f_out_true)

    grid = (n_pad // tile_n, n_pad // tile_k)

    grid_spec = pltpu.PrefetchScalarGridSpec(
        num_scalar_prefetch=0,
        grid=grid,
        in_specs=[
            pl.BlockSpec((tile_n, tile_k), lambda i, k: (i, k)),   # A (int8)
            pl.BlockSpec((tile_k, f_in_p), lambda i, k: (k, 0)),   # h (neighbours)
            pl.BlockSpec((tile_n, f_in_p), lambda i, k: (i, 0)),   # h (self rows)
            pl.BlockSpec((tile_n, 1), lambda i, k: (i, 0)),        # 1/in_degree
            pl.BlockSpec((f_in_p, f_out_p), lambda i, k: (0, 0)),  # W1
            pl.BlockSpec((f_in_p, f_out_p), lambda i, k: (0, 0)),  # W2
            pl.BlockSpec((1, f_out_p), lambda i, k: (0, 0)),       # bias
            pl.BlockSpec((1, f_out_p), lambda i, k: (0, 0)),       # gamma
            pl.BlockSpec((1, f_out_p), lambda i, k: (0, 0)),       # beta
        ],
        out_specs=pl.BlockSpec((tile_n, f_out_p), lambda i, k: (i, 0)),
        scratch_shapes=[pltpu.VMEM((tile_n, f_in_p), jnp.float32)],
    )

    # Double-buffered per-step VMEM footprint -> scoped limit.  Clamped to
    # 48 MiB so Mosaic keeps internal-scratch headroom below v7x's 64 MiB.
    vmem = (2 * tile_n * tile_k * 1            # A tiles (int8)
            + 2 * tile_k * f_in_p * 2          # neighbour h tiles (bf16)
            + 2 * tile_n * f_in_p * 2          # self h tiles
            + 2 * tile_n * 4                   # norm
            + 2 * 2 * f_in_p * f_out_p * 2     # W1, W2
            + 2 * 3 * f_out_p * 4              # b, gamma, beta
            + 2 * tile_n * f_out_p * out_isz   # output tiles
            + tile_n * f_in_p * 4)             # accumulator scratch
    vmem_limit = int(min(max(2 * vmem + (4 << 20), 16 << 20), 48 << 20))

    n_row_tiles = n_pad // tile_n
    flops = 2 * n_pad * n_pad * f_in_p + 2 * 2 * n_pad * f_in_p * f_out_p
    bytes_accessed = int(
        n_pad * n_pad * 1                        # A (int8), streamed once
        + n_row_tiles * n_pad * f_in_p * 2       # neighbour h, re-read per row tile
        + n_pad * f_in_p * 2                     # self h
        + 2 * f_in_p * f_out_p * 2               # W1, W2
        + n_pad * 4 + 3 * f_out_p * 4            # norm, b, gamma, beta
        + n_pad * f_out_p * out_isz)             # output

    return pl.pallas_call(
        kernel,
        out_shape=jax.ShapeDtypeStruct((n_pad, f_out_p), out_dtype),
        grid_spec=grid_spec,
        compiler_params=pltpu.CompilerParams(
            dimension_semantics=("parallel", "arbitrary"),
            vmem_limit_bytes=vmem_limit),
        cost_estimate=pl.CostEstimate(
            flops=flops,
            transcendentals=n_pad if use_lynorm else 0,
            bytes_accessed=bytes_accessed),
    )(a_i8, h, h, norm, w1, w2, b, gamma, beta)


def make_graphsage_params(key, in_feats, n_hidden, n_classes, n_layers):
    """Mirror GraphSAGE.__init__ parameter shapes, deterministic init."""
    dims = [(in_feats, n_hidden)] + [(n_hidden, n_hidden)] * (n_layers - 1) \
           + [(n_hidden, n_classes)]
    params = []
    for (f_in, f_out) in dims:
        key, kw, kb = jax.random.split(key, 3)
        stdv = 1.0 / math.sqrt(2 * f_in)
        # torch weight is (out, 2*in); we keep its transpose (2*in, out)
        w_t = jax.random.uniform(kw, (2 * f_in, f_out), jnp.float32, -stdv, stdv)
        bias = jax.random.uniform(kb, (1, f_out), jnp.float32, -stdv, stdv)
        gamma = jnp.ones((1, f_out), jnp.float32)   # LayerNorm affine
        beta = jnp.zeros((1, f_out), jnp.float32)
        params.append(dict(w1=w_t[:f_in], w2=w_t[f_in:], b=bias,
                           gamma=gamma, beta=beta))
    return params


def graphsage_forward(a, feats, params):
    """Full GraphSAGE forward: n_layers+1 GraphSAGELayers (last: no LN/act)."""
    n = a.shape[0]
    n_pad = _pad_rows(n)

    # Zero-pad the node dimension (exact for copy_src + sum aggregation:
    # padded columns contribute nothing; padded rows are sliced off below).
    a_p = jnp.pad(a, ((0, n_pad - n), (0, n_pad - n)))
    in_deg = jnp.sum(a_p, axis=1, keepdims=True)                       # f32
    norm = jnp.where(in_deg > 0, 1.0 / jnp.maximum(in_deg, 1.0), 0.0)  # inf->0
    a_i8 = a_p.astype(jnp.int8)                                        # 0/1 exact

    h = jnp.pad(feats, ((0, n_pad - n), (0, 0)))
    h = _pad_last(h, _round_up(h.shape[1], LANE)).astype(jnp.bfloat16)

    n_layers = len(params)
    for li, p in enumerate(params):
        last = (li == n_layers - 1)
        f_in, f_out = p["w1"].shape
        f_in_p = _round_up(f_in, LANE)
        f_out_p = _round_up(f_out, LANE)
        assert h.shape[1] == f_in_p

        # zero-pad weights / bias / LN affine to lane-dense shapes
        w1 = jnp.pad(p["w1"], ((0, f_in_p - f_in), (0, f_out_p - f_out))
                     ).astype(jnp.bfloat16)
        w2 = jnp.pad(p["w2"], ((0, f_in_p - f_in), (0, f_out_p - f_out))
                     ).astype(jnp.bfloat16)
        b = _pad_last(p["b"], f_out_p)
        gamma = _pad_last(p["gamma"], f_out_p)   # padded lanes -> gamma = 0
        beta = _pad_last(p["beta"], f_out_p)

        out_dtype = jnp.float32 if last else jnp.bfloat16
        h = sage_layer(a_i8, norm, h, w1, w2, b, gamma, beta,
                       f_out_true=f_out, use_lynorm=not last,
                       use_act=not last, out_dtype=out_dtype)

    n_classes = params[-1]["w1"].shape[1]
    return h[:n, :n_classes]


def graphsage_reference(a, feats, params, eps=1e-5, compute_dtype=None):
    """Pure-JAX reference.
    compute_dtype=None      -> full-f32 torch-module semantics.
    compute_dtype=bfloat16  -> mirrors the kernel's bf16 operand casts."""
    in_deg = jnp.sum(a, axis=1, keepdims=True)
    norm = jnp.where(in_deg > 0, 1.0 / jnp.maximum(in_deg, 1.0), 0.0)
    h = feats
    n = len(params)
    for li, p in enumerate(params):
        last = (li == n - 1)
        if compute_dtype is None:
            ah = (a @ h) * norm
            z = (jnp.concatenate([h, ah], axis=1)
                 @ jnp.concatenate([p["w1"], p["w2"]], axis=0) + p["b"])
        else:
            cd = compute_dtype
            a_c, h_c = a.astype(cd), h.astype(cd)
            ah = jnp.dot(a_c, h_c, preferred_element_type=jnp.float32) * norm
            z = (jnp.dot(h_c, p["w1"].astype(cd),
                         preferred_element_type=jnp.float32)
                 + jnp.dot(ah.astype(cd), p["w2"].astype(cd),
                           preferred_element_type=jnp.float32)
                 + p["b"])
        if not last:
            mu = jnp.mean(z, axis=-1, keepdims=True)
            var = jnp.mean((z - mu) ** 2, axis=-1, keepdims=True)
            if compute_dtype is None:
                z = (z - mu) / jnp.sqrt(var + eps)
            else:
                z = (z - mu) * jax.lax.rsqrt(var + eps)
            z = z * p["gamma"] + p["beta"]
            z = jnp.maximum(z, 0.0)
            if compute_dtype is not None:
                z = z.astype(compute_dtype).astype(jnp.float32)  # bf16 storage
        h = z
    return h


if __name__ == "__main__":
    key = jax.random.PRNGKey(0)

    def run_case(case_key, n_nodes, in_feats, n_hidden, n_classes, n_layers):
        k_adj, k_feat, k_param = jax.random.split(case_key, 3)
        # deterministic sparse-ish directed graph as a dense adjacency
        a = jax.random.bernoulli(k_adj, p=0.1,
                                 shape=(n_nodes, n_nodes)).astype(jnp.float32)
        feats = jax.random.normal(k_feat, (n_nodes, in_feats), jnp.float32)
        params = make_graphsage_params(k_param, in_feats, n_hidden,
                                       n_classes, n_layers)

        out = jax.block_until_ready(graphsage_forward(a, feats, params))
        assert out.shape == (n_nodes, n_classes)

        # Tight check: reference with the same bf16 operand casts as the kernel.
        ref_bf16 = graphsage_reference(a, feats, params,
                                       compute_dtype=jnp.bfloat16)
        assert jnp.allclose(out, ref_bf16, atol=2e-3, rtol=2e-3), \
            f"mismatch vs bf16-matched reference (N={n_nodes})"

        # Loose sanity check: full-f32 torch-semantics reference.
        ref_f32 = graphsage_reference(a, feats, params)
        assert jnp.allclose(out, ref_f32, atol=1e-1, rtol=1e-1), \
            f"mismatch vs f32 reference (N={n_nodes})"

    key, k1, k2 = jax.random.split(key, 3)
    # Small, tile-aligned cluster.
    run_case(k1, n_nodes=128, in_feats=32, n_hidden=32, n_classes=16,
             n_layers=2)
    # Non-tile-aligned cluster exercising the zero-padded node dimension.
    run_case(k2, n_nodes=200, in_feats=32, n_hidden=32, n_classes=16,
             n_layers=2)

    print("KERNEL_OK")
</pallas_src>

<mosaic_0001>
module attributes {stable_mosaic.version = 11 : i64} {
  func.func @_sage_layer_kernel(%arg0: i32, %arg1: i32, %arg2: memref<128x128xi8, #tpu.memory_space<vmem>>, %arg3: memref<128x128xbf16, #tpu.memory_space<vmem>>, %arg4: memref<128x128xbf16, #tpu.memory_space<vmem>>, %arg5: memref<128x1xf32, #tpu.memory_space<vmem>>, %arg6: memref<128x128xbf16, #tpu.memory_space<vmem>>, %arg7: memref<128x128xbf16, #tpu.memory_space<vmem>>, %arg8: memref<1x128xf32, #tpu.memory_space<vmem>>, %arg9: memref<1x128xf32, #tpu.memory_space<vmem>>, %arg10: memref<1x128xf32, #tpu.memory_space<vmem>>, %arg11: memref<128x128xbf16, #tpu.memory_space<vmem>>, %arg12: memref<128x128xf32, #tpu.memory_space<vmem>>) attributes {dimension_semantics = [#tpu.dimension_semantics<parallel>, #tpu.dimension_semantics<arbitrary>], iteration_bounds = array<i64: 1, 1>, scalar_prefetch = 0 : i64, scratch_operands = 1 : i64, tpu.core_type = #tpu.core_type<tc>, window_params = [{transform_indices = @transform_0, window_bounds = array<i64: 128, 128>}, {transform_indices = @transform_1, window_bounds = array<i64: 128, 128>}, {transform_indices = @transform_2, window_bounds = array<i64: 128, 128>}, {transform_indices = @transform_3, window_bounds = array<i64: 128, 1>}, {pipeline_mode = #tpu.pipeline_mode<synchronous>, transform_indices = @transform_4, window_bounds = array<i64: 128, 128>}, {pipeline_mode = #tpu.pipeline_mode<synchronous>, transform_indices = @transform_5, window_bounds = array<i64: 128, 128>}, {pipeline_mode = #tpu.pipeline_mode<synchronous>, transform_indices = @transform_6, window_bounds = array<i64: 1, 128>}, {pipeline_mode = #tpu.pipeline_mode<synchronous>, transform_indices = @transform_7, window_bounds = array<i64: 1, 128>}, {pipeline_mode = #tpu.pipeline_mode<synchronous>, transform_indices = @transform_8, window_bounds = array<i64: 1, 128>}, {transform_indices = @transform_9, window_bounds = array<i64: 128, 128>}]} {
    %c0_i32 = arith.constant 0 : i32
    %0 = arith.cmpi eq, %arg1, %c0_i32 : i32
    %1 = arith.extui %0 : i1 to i32
    %c0_i32_0 = arith.constant 0 : i32
    %2 = arith.cmpi ne, %1, %c0_i32_0 : i32
    scf.if %2 {
      %cst_10 = arith.constant 0.000000e+00 : f32
      %13 = vector.broadcast %cst_10 : f32 to vector<128x128xf32>
      %c0_11 = arith.constant 0 : index
      %c0_12 = arith.constant 0 : index
      %14 = vector.load %arg12[%c0_11, %c0_12] : memref<128x128xf32, #tpu.memory_space<vmem>>, vector<128x128xf32>
      tpu.vector_store %arg12[%c0_11, %c0_12], %13 {strides = array<i32>} : memref<128x128xf32, #tpu.memory_space<vmem>>, vector<128x128xf32>,
    } else {
    }
    %c0 = arith.constant 0 : index
    %c0_1 = arith.constant 0 : index
    %3 = vector.load %arg12[%c0, %c0_1] : memref<128x128xf32, #tpu.memory_space<vmem>>, vector<128x128xf32>
    %c0_2 = arith.constant 0 : index
    %c0_3 = arith.constant 0 : index
    %4 = vector.load %arg2[%c0_2, %c0_3] : memref<128x128xi8, #tpu.memory_space<vmem>>, vector<128x128xi8>
    %5 = arith.sitofp %4 : vector<128x128xi8> to vector<128x128xbf16>
    %c0_4 = arith.constant 0 : index
    %c0_5 = arith.constant 0 : index
    %6 = vector.load %arg3[%c0_4, %c0_5] : memref<128x128xbf16, #tpu.memory_space<vmem>>, vector<128x128xbf16>
    %cst = arith.constant dense<0.000000e+00> : vector<128x128xf32>
    %7 = tpu.matmul %5, %6, %cst {dimension_numbers = #tpu.dot_dimension_numbers<[1], [0], [0], [1], [0, 0, 1, 1], [], []>} : vector<128x128xbf16>, vector<128x128xbf16>, vector<128x128xf32> -> vector<128x128xf32>
    %8 = arith.addf %3, %7 : vector<128x128xf32>
    %c0_6 = arith.constant 0 : index
    %c0_7 = arith.constant 0 : index
    %9 = vector.load %arg12[%c0_6, %c0_7] : memref<128x128xf32, #tpu.memory_space<vmem>>, vector<128x128xf32>
    tpu.vector_store %arg12[%c0_6, %c0_7], %8 {strides = array<i32>} : memref<128x128xf32, #tpu.memory_space<vmem>>, vector<128x128xf32>,
    %c0_i32_8 = arith.constant 0 : i32
    %10 = arith.cmpi eq, %arg1, %c0_i32_8 : i32
    %11 = arith.extui %10 : i1 to i32
    %c0_i32_9 = arith.constant 0 : i32
    %12 = arith.cmpi ne, %11, %c0_i32_9 : i32
    scf.if %12 {
      %c0_10 = arith.constant 0 : index
      %c0_11 = arith.constant 0 : index
      %13 = vector.load %arg12[%c0_10, %c0_11] : memref<128x128xf32, #tpu.memory_space<vmem>>, vector<128x128xf32>
      %c0_12 = arith.constant 0 : index
      %c0_13 = arith.constant 0 : index
      %14 = vector.load %arg5[%c0_12, %c0_13] : memref<128x1xf32, #tpu.memory_space<vmem>>, vector<128x1xf32>
      %15 = vector.broadcast %14 : vector<128x1xf32> to vector<128x128xf32>
      %16 = arith.mulf %13, %15 : vector<128x128xf32>
      %c0_14 = arith.constant 0 : index
      %c0_15 = arith.constant 0 : index
      %17 = vector.load %arg4[%c0_14, %c0_15] : memref<128x128xbf16, #tpu.memory_space<vmem>>, vector<128x128xbf16>
      %c0_16 = arith.constant 0 : index
      %c0_17 = arith.constant 0 : index
      %18 = vector.load %arg6[%c0_16, %c0_17] : memref<128x128xbf16, #tpu.memory_space<vmem>>, vector<128x128xbf16>
      %cst_18 = arith.constant dense<0.000000e+00> : vector<128x128xf32>
      %19 = tpu.matmul %17, %18, %cst_18 {dimension_numbers = #tpu.dot_dimension_numbers<[1], [0], [0], [1], [0, 0, 1, 1], [], []>} : vector<128x128xbf16>, vector<128x128xbf16>, vector<128x128xf32> -> vector<128x128xf32>
      %20 = arith.truncf %16 : vector<128x128xf32> to vector<128x128xbf16>
      %c0_19 = arith.constant 0 : index
      %c0_20 = arith.constant 0 : index
      %21 = vector.load %arg7[%c0_19, %c0_20] : memref<128x128xbf16, #tpu.memory_space<vmem>>, vector<128x128xbf16>
      %cst_21 = arith.constant dense<0.000000e+00> : vector<128x128xf32>
      %22 = tpu.matmul %20, %21, %cst_21 {dimension_numbers = #tpu.dot_dimension_numbers<[1], [0], [0], [1], [0, 0, 1, 1], [], []>} : vector<128x128xbf16>, vector<128x128xbf16>, vector<128x128xf32> -> vector<128x128xf32>
      %23 = arith.addf %19, %22 : vector<128x128xf32>
      %c0_22 = arith.constant 0 : index
      %c0_23 = arith.constant 0 : index
      %24 = vector.load %arg8[%c0_22, %c0_23] : memref<1x128xf32, #tpu.memory_space<vmem>>, vector<1x128xf32>
      %25 = vector.broadcast %24 : vector<1x128xf32> to vector<128x128xf32>
      %26 = arith.addf %23, %25 : vector<128x128xf32>
      %cst_24 = arith.constant dense<0.000000e+00> : vector<128xf32>
      %27 = vector.multi_reduction <add>, %26, %cst_24 [1] : vector<128x128xf32> to vector<128xf32>
      %28 = vector.shape_cast %27 : vector<128xf32> to vector<128x1xf32>
      %cst_25 = arith.constant 3.125000e-02 : f32
      %29 = vector.broadcast %cst_25 : f32 to vector<128x1xf32>
      %30 = arith.mulf %28, %29 : vector<128x1xf32>
      %31 = vector.broadcast %30 : vector<128x1xf32> to vector<128x128xf32>
      %32 = arith.subf %26, %31 : vector<128x128xf32>
      %33 = tpu.iota {dimensions = array<i32: 1>} : vector<128x128xi32>
      %c32_i32 = arith.constant 32 : i32
      %34 = vector.broadcast %c32_i32 : i32 to vector<128x128xi32>
      %35 = arith.cmpi slt, %33, %34 : vector<128x128xi32>
      %cst_26 = arith.constant 0.000000e+00 : f32
      %36 = vector.broadcast %cst_26 : f32 to vector<128x128xf32>
      %37 = arith.select %35, %32, %36 : vector<128x128xi1>, vector<128x128xf32>
      %38 = arith.mulf %37, %37 : vector<128x128xf32>
      %cst_27 = arith.constant dense<0.000000e+00> : vector<128xf32>
      %39 = vector.multi_reduction <add>, %38, %cst_27 [1] : vector<128x128xf32> to vector<128xf32>
      %40 = vector.shape_cast %39 : vector<128xf32> to vector<128x1xf32>
      %cst_28 = arith.constant 3.125000e-02 : f32
      %41 = vector.broadcast %cst_28 : f32 to vector<128x1xf32>
      %42 = arith.mulf %40, %41 : vector<128x1xf32>
      %cst_29 = arith.constant 9.99999974E-6 : f32
      %43 = vector.broadcast %cst_29 : f32 to vector<128x1xf32>
      %44 = arith.addf %42, %43 : vector<128x1xf32>
      %45 = math.rsqrt %44 : vector<128x1xf32>
      %46 = vector.broadcast %45 : vector<128x1xf32> to vector<128x128xf32>
      %47 = arith.mulf %37, %46 : vector<128x128xf32>
      %c0_30 = arith.constant 0 : index
      %c0_31 = arith.constant 0 : index
      %48 = vector.load %arg9[%c0_30, %c0_31] : memref<1x128xf32, #tpu.memory_space<vmem>>, vector<1x128xf32>
      %49 = vector.broadcast %48 : vector<1x128xf32> to vector<128x128xf32>
      %50 = arith.mulf %47, %49 : vector<128x128xf32>
      %c0_32 = arith.constant 0 : index
      %c0_33 = arith.constant 0 : index
      %51 = vector.load %arg10[%c0_32, %c0_33] : memref<1x128xf32, #tpu.memory_space<vmem>>, vector<1x128xf32>
      %52 = vector.broadcast %51 : vector<1x128xf32> to vector<128x128xf32>
      %53 = arith.addf %50, %52 : vector<128x128xf32>
      %cst_34 = arith.constant 0.000000e+00 : f32
      %54 = vector.broadcast %cst_34 : f32 to vector<128x128xf32>
      %55 = arith.maximumf %53, %54 : vector<128x128xf32>
      %56 = arith.truncf %55 : vector<128x128xf32> to vector<128x128xbf16>
      %c0_35 = arith.constant 0 : index
      %c0_36 = arith.constant 0 : index
      %57 = vector.load %arg11[%c0_35, %c0_36] : memref<128x128xbf16, #tpu.memory_space<vmem>>, vector<128x128xbf16>
      tpu.vector_store %arg11[%c0_35, %c0_36], %56 {strides = array<i32>} : memref<128x128xbf16, #tpu.memory_space<vmem>>, vector<128x128xbf16>,
    } else {
    }
    return
  }
  func.func @transform_0(%arg0: i32, %arg1: i32) -> (i32, i32) {
    %c0_i32 = arith.constant 0 : i32
    return %arg0, %arg1 : i32, i32
  }
  func.func @transform_1(%arg0: i32, %arg1: i32) -> (i32, i32) {
    %c0_i32 = arith.constant 0 : i32
    %c0_i32_0 = arith.constant 0 : i32
    return %arg1, %c0_i32 : i32, i32
  }
  func.func @transform_2(%arg0: i32, %arg1: i32) -> (i32, i32) {
    %c0_i32 = arith.constant 0 : i32
    %c0_i32_0 = arith.constant 0 : i32
    return %arg0, %c0_i32 : i32, i32
  }
  func.func @transform_3(%arg0: i32, %arg1: i32) -> (i32, i32) {
    %c0_i32 = arith.constant 0 : i32
    %c0_i32_0 = arith.constant 0 : i32
    return %arg0, %c0_i32 : i32, i32
  }
  func.func @transform_4(%arg0: i32, %arg1: i32) -> (i32, i32) {
    %c0_i32 = arith.constant 0 : i32
    %c0_i32_0 = arith.constant 0 : i32
    %c0_i32_1 = arith.constant 0 : i32
    return %c0_i32, %c0_i32_0 : i32, i32
  }
  func.func @transform_5(%arg0: i32, %arg1: i32) -> (i32, i32) {
    %c0_i32 = arith.constant 0 : i32
    %c0_i32_0 = arith.constant 0 : i32
    %c0_i32_1 = arith.constant 0 : i32
    return %c0_i32, %c0_i32_0 : i32, i32
  }
  func.func @transform_6(%arg0: i32, %arg1: i32) -> (i32, i32) {
    %c0_i32 = arith.constant 0 : i32
    %c0_i32_0 = arith.constant 0 : i32
    %c0_i32_1 = arith.constant 0 : i32
    return %c0_i32, %c0_i32_0 : i32, i32
  }
  func.func @transform_7(%arg0: i32, %arg1: i32) -> (i32, i32) {
    %c0_i32 = arith.constant 0 : i32
    %c0_i32_0 = arith.constant 0 : i32
    %c0_i32_1 = arith.constant 0 : i32
    return %c0_i32, %c0_i32_0 : i32, i32
  }
  func.func @transform_8(%arg0: i32, %arg1: i32) -> (i32, i32) {
    %c0_i32 = arith.constant 0 : i32
    %c0_i32_0 = arith.constant 0 : i32
    %c0_i32_1 = arith.constant 0 : i32
    return %c0_i32, %c0_i32_0 : i32, i32
  }
  func.func @transform_9(%arg0: i32, %arg1: i32) -> (i32, i32) {
    %c0_i32 = arith.constant 0 : i32
    %c0_i32_0 = arith.constant 0 : i32
    return %arg0, %c0_i32 : i32, i32
  }
}

</mosaic_0001>

<llo_original>
// kernel: tpu_custom_call.1
$region0: #{tpu_custom_call.1}
  #allocation0 [shape = 'u32[]', space=smem, size = 0x4, offset = 0x4, fixed_abs, tag = 'smem constant byte address 0x4 - core index']
  #allocation1 [shape = 'u32[144,128]{1,0:T(1,128)}', space=vmem, size = 0x12000, scoped, tag = 'internal scratch']
  #allocation2 [shape = 'f32[128,128]{1,0:T(8,128)}', space=vmem, size = 0x10000, scoped, tag = 'scratch operand']
  %s0 = inlined_call_operand.hbm [shape: s8[128,128], index: 0, kind: input, shape index: {}]
  %s1 = inlined_call_operand.vmem [shape: bf16[128,128], index: 1, kind: input, shape index: {}]
  %s2 = inlined_call_operand.vmem [shape: bf16[128,128], index: 2, kind: input, shape index: {}]
  %s3 = inlined_call_operand.vmem [shape: f32[128,1], index: 3, kind: input, shape index: {}]
  %s4 = inlined_call_operand.hbm [shape: bf16[128,128], index: 4, kind: input, shape index: {}]
  %s5 = inlined_call_operand.hbm [shape: bf16[128,128], index: 5, kind: input, shape index: {}]
  %s6 = inlined_call_operand.vmem [shape: f32[1,128], index: 6, kind: input, shape index: {}]
  %s7 = inlined_call_operand.vmem [shape: f32[1,128], index: 7, kind: input, shape index: {}]
  %s8 = inlined_call_operand.vmem [shape: f32[1,128], index: 8, kind: input, shape index: {}]
  %s9 = inlined_call_operand.hbm [shape: bf16[128,128], index: 9, kind: output, shape index: {}]
  %s10 = sld [smem:[#allocation0]]
  $region66: #{tpu_custom_call.1} parent=0
    _
  %s12 = ssub.s32 1, %s10
  %s13 = scalar_select 0, %s12, %s10
  $region1: #{tpu_custom_call.1} parent=0
    #allocation3 [shape = 'u8[16384]{0}', space=vmem, size = 0x4000, scoped, tag = 'input window, operand 0, single buffered']
    #allocation4 [shape = 's32[1]{0}', space=sflag, size = 0x4, scoped, tag = 'scoped memory for tpu_custom_call.1']
    #allocation5 [shape = 's32[1]{0}', space=sflag, size = 0x4, scoped, tag = 'scoped memory for tpu_custom_call.1']
    #allocation6 [shape = 'u8[32768]{0}', space=vmem, size = 0x8000, scoped, tag = 'input window, operand 4, single buffered']
    #allocation7 [shape = 's32[1]{0}', space=sflag, size = 0x4, scoped, tag = 'scoped memory for tpu_custom_call.1']
    #allocation8 [shape = 'u8[32768]{0}', space=vmem, size = 0x8000, scoped, tag = 'input window, operand 5, single buffered']
    #allocation9 [shape = 'u8[32768]{0}', space=vmem, size = 0x8000, scoped, tag = 'output window, operand 0, single buffered']
    %14 = vsyncpa [#allocation4], 0
    %15 = vsyncpa [#allocation7], 0
    %16 = vsyncpa [#allocation5], 0
    // Predicated region
    $region2: #{tpu_custom_call.1} parent=1 // pred_check
      _
    $region3: #{tpu_custom_call.1} parent=1 // pred_check_branch
      %18 = sbr.rel (0) target = $region5
    $region4: #{tpu_custom_call.1} parent=1 // pred_region
      %s20 = ssub.s32 512, 512
      %21 = vsyncadd [#allocation4], %s20
      %s22 = sshll.u32 [#allocation3], 4
      %s23 = int_to_ptr.vmem [resolvable:$true] %s22
      %28 = dma.hbm_to_vmem [thread:$0]  %s0, 512, %s23, [#allocation4], 128, 128, 8
    $region5: #{tpu_custom_call.1} parent=1 // pred_fallthru
      _
    // Predicated region
    $region6: #{tpu_custom_call.1} parent=1 // pred_check
      _
    $region7: #{tpu_custom_call.1} parent=1 // pred_check_branch
      %30 = sbr.rel (0) target = $region9
    $region8: #{tpu_custom_call.1} parent=1 // pred_region
      _
    $region9: #{tpu_custom_call.1} parent=1 // pred_fallthru
      _
    // Predicated region
    $region10: #{tpu_custom_call.1} parent=1 // pred_check
      _
    $region11: #{tpu_custom_call.1} parent=1 // pred_check_branch
      %32 = sbr.rel (0) target = $region13
    $region12: #{tpu_custom_call.1} parent=1 // pred_region
      _
    $region13: #{tpu_custom_call.1} parent=1 // pred_fallthru
      _
    // Predicated region
    $region14: #{tpu_custom_call.1} parent=1 // pred_check
      _
    $region15: #{tpu_custom_call.1} parent=1 // pred_check_branch
      %34 = sbr.rel (0) target = $region17
    $region16: #{tpu_custom_call.1} parent=1 // pred_region
      _
    $region17: #{tpu_custom_call.1} parent=1 // pred_fallthru
      _
    // Predicated region
    $region18: #{tpu_custom_call.1} parent=1 // pred_check
      _
    $region19: #{tpu_custom_call.1} parent=1 // pred_check_branch
      %36 = sbr.rel (0) target = $region21
    $region20: #{tpu_custom_call.1} parent=1 // pred_region
      %s38 = ssub.s32 1024, 1024
      %39 = vsyncadd [#allocation7], %s38
      %s40 = sshll.u32 [#allocation6], 4
      %s41 = int_to_ptr.vmem [resolvable:$true] %s40
      %46 = dma.hbm_to_vmem [thread:$0]  %s4, 1024, %s41, [#allocation7], 64, 64, 4
    $region21: #{tpu_custom_call.1} parent=1 // pred_fallthru
      _
    // Predicated region
    $region22: #{tpu_custom_call.1} parent=1 // pred_check
      _
    $region23: #{tpu_custom_call.1} parent=1 // pred_check_branch
      %48 = sbr.rel (0) target = $region25
    $region24: #{tpu_custom_call.1} parent=1 // pred_region
      %s50 = ssub.s32 1024, 1024
      %51 = vsyncadd [#allocation7], %s50
      %s52 = sshll.u32 [#allocation8], 4
      %s53 = int_to_ptr.vmem [resolvable:$true] %s52
      %58 = dma.hbm_to_vmem [thread:$0]  %s5, 1024, %s53, [#allocation7], 64, 64, 4
    $region25: #{tpu_custom_call.1} parent=1 // pred_fallthru
      _
    // Predicated region
    $region26: #{tpu_custom_call.1} parent=1 // pred_check
      _
    $region27: #{tpu_custom_call.1} parent=1 // pred_check_branch
      %60 = sbr.rel (0) target = $region29
    $region28: #{tpu_custom_call.1} parent=1 // pred_region
      _
    $region29: #{tpu_custom_call.1} parent=1 // pred_fallthru
      _
    // Predicated region
    $region30: #{tpu_custom_call.1} parent=1 // pred_check
      _
    $region31: #{tpu_custom_call.1} parent=1 // pred_check_branch
      %62 = sbr.rel (0) target = $region33
    $region32: #{tpu_custom_call.1} parent=1 // pred_region
      _
    $region33: #{tpu_custom_call.1} parent=1 // pred_fallthru
      _
    // Predicated region
    $region34: #{tpu_custom_call.1} parent=1 // pred_check
      _
    $region35: #{tpu_custom_call.1} parent=1 // pred_check_branch
      %64 = sbr.rel (0) target = $region37
    $region36: #{tpu_custom_call.1} parent=1 // pred_region
      _
    $region37: #{tpu_custom_call.1} parent=1 // pred_fallthru
      _
    // Predicated region
    $region38: #{tpu_custom_call.1} parent=1 // pred_check
      _
    $region39: #{tpu_custom_call.1} parent=1 // pred_check_branch
      %66 = sbr.rel (0) target = $region41
    $region40: #{tpu_custom_call.1} parent=1 // pred_region
      %67 = dma.done [#allocation4], 512
    $region41: #{tpu_custom_call.1} parent=1 // pred_fallthru
      _
    // Predicated region
    $region42: #{tpu_custom_call.1} parent=1 // pred_check
      _
    $region43: #{tpu_custom_call.1} parent=1 // pred_check_branch
      %69 = sbr.rel (0) target = $region45
    $region44: #{tpu_custom_call.1} parent=1 // pred_region
      %70 = dma.done [#allocation7], 1024
    $region45: #{tpu_custom_call.1} parent=1 // pred_fallthru
      _
    // Predicated region
    $region46: #{tpu_custom_call.1} parent=1 // pred_check
      _
    $region47: #{tpu_custom_call.1} parent=1 // pred_check_branch
      %72 = sbr.rel (0) target = $region49
    $region48: #{tpu_custom_call.1} parent=1 // pred_region
      %73 = dma.done [#allocation7], 1024
    $region49: #{tpu_custom_call.1} parent=1 // pred_fallthru
      _
    %p75 = scmp.eq.s32.totalorder 0, 0
    // Predicated region
    $region50: #{tpu_custom_call.1} parent=1 // pred_check
      %p76 = pneg %p75
    $region51: #{tpu_custom_call.1} parent=1 // pred_check_branch
      %78 = sbr.rel (%p76) target = $region53
    $region52: #{tpu_custom_call.1} parent=1 // pred_region
      %79 = vst [vmem:[#allocation2] sm:$0xff] 0.0
      %80 = vst [vmem:[#allocation2 + $0x8] sm:$0xff] 0.0
      %81 = vst [vmem:[#allocation2 + $0x10] sm:$0xff] 0.0
      %82 = vst [vmem:[#allocation2 + $0x18] sm:$0xff] 0.0
      %83 = vst [vmem:[#allocation2 + $0x20] sm:$0xff] 0.0
      %84 = vst [vmem:[#allocation2 + $0x28] sm:$0xff] 0.0
      %85 = vst [vmem:[#allocation2 + $0x30] sm:$0xff] 0.0
      %86 = vst [vmem:[#allocation2 + $0x38] sm:$0xff] 0.0
      %87 = vst [vmem:[#allocation2 + $0x40] sm:$0xff] 0.0
      %88 = vst [vmem:[#allocation2 + $0x48] sm:$0xff] 0.0
      %89 = vst [vmem:[#allocation2 + $0x50] sm:$0xff] 0.0
      %90 = vst [vmem:[#allocation2 + $0x58] sm:$0xff] 0.0
      %91 = vst [vmem:[#allocation2 + $0x60] sm:$0xff] 0.0
      %92 = vst [vmem:[#allocation2 + $0x68] sm:$0xff] 0.0
      %93 = vst [vmem:[#allocation2 + $0x70] sm:$0xff] 0.0
      %94 = vst [vmem:[#allocation2 + $0x78] sm:$0xff] 0.0
    $region53: #{tpu_custom_call.1} parent=1 // pred_fallthru
      _
    %v95 = vld [vmem:[#allocation2] sm:$0xff]
    %v96 = vld [vmem:[#allocation2 + $0x8] sm:$0xff]
    %v97 = vld [vmem:[#allocation2 + $0x10] sm:$0xff]
    %v98 = vld [vmem:[#allocation2 + $0x18] sm:$0xff]
    %v99 = vld [vmem:[#allocation2 + $0x20] sm:$0xff]
    %v100 = vld [vmem:[#allocation2 + $0x28] sm:$0xff]
    %v101 = vld [vmem:[#allocation2 + $0x30] sm:$0xff]
    %v102 = vld [vmem:[#allocation2 + $0x38] sm:$0xff]
    %v103 = vld [vmem:[#allocation2 + $0x40] sm:$0xff]
    %v104 = vld [vmem:[#allocation2 + $0x48] sm:$0xff]
    %v105 = vld [vmem:[#allocation2 + $0x50] sm:$0xff]
    %v106 = vld [vmem:[#allocation2 + $0x58] sm:$0xff]
    %v107 = vld [vmem:[#allocation2 + $0x60] sm:$0xff]
    %v108 = vld [vmem:[#allocation2 + $0x68] sm:$0xff]
    %v109 = vld [vmem:[#allocation2 + $0x70] sm:$0xff]
    %v110 = vld [vmem:[#allocation2 + $0x78] sm:$0xff]
    %v111 = vld [vmem:[#allocation3] sm:$0xff]
    %v112 = vld [vmem:[#allocation3 + $0x8] sm:$0xff]
    %v113 = vld [vmem:[#allocation3 + $0x10] sm:$0xff]
    %v114 = vld [vmem:[#allocation3 + $0x18] sm:$0xff]
    %v115 = vunpack.c.l.s8.bf16 %v111
    %v116 = vunpack.c.h.s8.bf16 %v111
    %v117 = vunpack.c.l.s8.bf16 %v112
    %v118 = vunpack.c.h.s8.bf16 %v112
    %v119 = vunpack.c.l.s8.bf16 %v113
    %v120 = vunpack.c.h.s8.bf16 %v113
    %v121 = vunpack.c.l.s8.bf16 %v114
    %v122 = vunpack.c.h.s8.bf16 %v114
    %v123 = vld [vmem:[%s1] sm:$0xf]
    %v124 = vld [vmem:[%s1 + $0x4] sm:$0xf]
    %v125 = vld [vmem:[%s1 + $0x8] sm:$0xf]
    %v126 = vld [vmem:[%s1 + $0xc] sm:$0xf]
    %v127 = vld [vmem:[%s1 + $0x10] sm:$0xf]
    %v128 = vld [vmem:[%s1 + $0x14] sm:$0xf]
    %v129 = vld [vmem:[%s1 + $0x18] sm:$0xf]
    %v130 = vld [vmem:[%s1 + $0x1c] sm:$0xf]
    %v131 = vld [vmem:[%s1 + $0x20] sm:$0xf]
    %v132 = vld [vmem:[%s1 + $0x24] sm:$0xf]
    %v133 = vld [vmem:[%s1 + $0x28] sm:$0xf]
    %v134 = vld [vmem:[%s1 + $0x2c] sm:$0xf]
    %v135 = vld [vmem:[%s1 + $0x30] sm:$0xf]
    %v136 = vld [vmem:[%s1 + $0x34] sm:$0xf]
    %v137 = vld [vmem:[%s1 + $0x38] sm:$0xf]
    %v138 = vld [vmem:[%s1 + $0x3c] sm:$0xf]
    %v155 = vunpack.c.l.b16 %v123
    %v156 = vunpack.c.l.b16 %v124
    %v157 = vunpack.c.l.b16 %v125
    %v158 = vunpack.c.l.b16 %v126
    %v159 = vunpack.c.l.b16 %v127
    %v160 = vunpack.c.l.b16 %v128
    %v161 = vunpack.c.l.b16 %v129
    %v162 = vunpack.c.l.b16 %v130
    %v163 = vunpack.c.l.b16 %v131
    %v164 = vunpack.c.l.b16 %v132
    %v165 = vunpack.c.l.b16 %v133
    %v166 = vunpack.c.l.b16 %v134
    %v167 = vunpack.c.l.b16 %v135
    %v168 = vunpack.c.l.b16 %v136
    %v169 = vunpack.c.l.b16 %v137
    %v170 = vunpack.c.l.b16 %v138
    %v171 = vpack.c.b16 %v156, %v155
    %v172 = vpack.c.b16 %v158, %v157
    %v173 = vpack.c.b16 %v160, %v159
    %v174 = vpack.c.b16 %v162, %v161
    %v175 = vpack.c.b16 %v164, %v163
    %v176 = vpack.c.b16 %v166, %v165
    %v177 = vpack.c.b16 %v168, %v167
    %v178 = vpack.c.b16 %v170, %v169
    %187 = vmatprep.subr.bf16.mxu0 0
    %188 = vmatpush1.bf16.msra.mxu0 %v171
    %189 = vmatprep.subr.bf16.mxu0 0
    %190 = vmatpush1.bf16.msra.mxu0 %v172
    %191 = vmatprep.subr.bf16.mxu0 0
    %192 = vmatpush1.bf16.msra.mxu0 %v173
    %193 = vmatprep.subr.bf16.mxu0 0
    %194 = vmatpush1.bf16.msra.mxu0 %v174
    %195 = vmatprep.subr.bf16.mxu0 0
    %196 = vmatpush1.bf16.msra.mxu0 %v175
    %197 = vmatprep.subr.bf16.mxu0 0
    %198 = vmatpush1.bf16.msra.mxu0 %v176
    %199 = vmatprep.subr.bf16.mxu0 0
    %200 = vmatpush1.bf16.msra.mxu0 %v177
    %201 = vmatprep.subr.bf16.mxu0 0
    %202 = vmatpush1.bf16.msra.mxu0 %v178
    %203 = vmatprep.subr.bf16.mxu0 0
    %204 = vmatpush1.bf16.msra.mxu0 0
    %205 = vmatprep.subr.bf16.mxu0 0
    %206 = vmatpush1.bf16.msra.mxu0 0
    %207 = vmatprep.subr.bf16.mxu0 0
    %208 = vmatpush1.bf16.msra.mxu0 0
    %209 = vmatprep.subr.bf16.mxu0 0
    %210 = vmatpush1.bf16.msra.mxu0 0
    %211 = vmatprep.subr.bf16.mxu0 0
    %212 = vmatpush1.bf16.msra.mxu0 0
    %213 = vmatprep.subr.bf16.mxu0 0
    %214 = vmatpush1.bf16.msra.mxu0 0
    %215 = vmatprep.subr.bf16.mxu0 0
    %216 = vmatpush1.bf16.msra.mxu0 0
    %217 = vmatprep.subr.bf16.mxu0 0
    %218 = vmatpush1.bf16.msra.mxu0 0
    %219 = vmatprep.mubr.bf16.mxu0 0
    %220 = vmatmul.mubr.bf16.gmra.mrb[0].mxu0 %v115
    %v221 = vpop.f32.mrb[0].mxu0
    %v222 = vadd.f32 0.0, %v221
    %v223 = vpop.f32.mrb[0].mxu0
    %v224 = vpop.f32.mrb[0].mxu0
    %v225 = vadd.f32 0.0, %v224
    %v226 = vpop.f32.mrb[0].mxu0
    %227 = vmatprep.mubr.bf16.mxu0 0
    %228 = vmatmul.mubr.bf16.gmra.mrb[0].mxu0 %v116
    %v229 = vpop.f32.mrb[0].mxu0
    %v230 = vadd.f32 0.0, %v229
    %v231 = vpop.f32.mrb[0].mxu0
    %v232 = vpop.f32.mrb[0].mxu0
    %v233 = vadd.f32 0.0, %v232
    %v234 = vpop.f32.mrb[0].mxu0
    %235 = vmatprep.mubr.bf16.mxu0 0
    %236 = vmatmul.mubr.bf16.gmra.mrb[0].mxu0 %v117
    %v237 = vpop.f32.mrb[0].mxu0
    %v238 = vadd.f32 0.0, %v237
    %v239 = vpop.f32.mrb[0].mxu0
    %v240 = vpop.f32.mrb[0].mxu0
    %v241 = vadd.f32 0.0, %v240
    %v242 = vpop.f32.mrb[0].mxu0
    %243 = vmatprep.mubr.bf16.mxu0 0
    %244 = vmatmul.mubr.bf16.gmra.mrb[0].mxu0 %v118
    %v245 = vpop.f32.mrb[0].mxu0
    %v246 = vadd.f32 0.0, %v245
    %v247 = vpop.f32.mrb[0].mxu0
    %v248 = vpop.f32.mrb[0].mxu0
    %v249 = vadd.f32 0.0, %v248
    %v250 = vpop.f32.mrb[0].mxu0
    %251 = vmatprep.mubr.bf16.mxu0 0
    %252 = vmatmul.mubr.bf16.gmra.mrb[0].mxu0 %v119
    %v253 = vpop.f32.mrb[0].mxu0
    %v254 = vadd.f32 0.0, %v253
    %v255 = vpop.f32.mrb[0].mxu0
    %v256 = vpop.f32.mrb[0].mxu0
    %v257 = vadd.f32 0.0, %v256
    %v258 = vpop.f32.mrb[0].mxu0
    %259 = vmatprep.mubr.bf16.mxu0 0
    %260 = vmatmul.mubr.bf16.gmra.mrb[0].mxu0 %v120
    %v261 = vpop.f32.mrb[0].mxu0
    %v262 = vadd.f32 0.0, %v261
    %v263 = vpop.f32.mrb[0].mxu0
    %v264 = vpop.f32.mrb[0].mxu0
    %v265 = vadd.f32 0.0, %v264
    %v266 = vpop.f32.mrb[0].mxu0
    %267 = vmatprep.mubr.bf16.mxu0 0
    %268 = vmatmul.mubr.bf16.gmra.mrb[0].mxu0 %v121
    %v269 = vpop.f32.mrb[0].mxu0
    %v270 = vadd.f32 0.0, %v269
    %v271 = vpop.f32.mrb[0].mxu0
    %v272 = vpop.f32.mrb[0].mxu0
    %v273 = vadd.f32 0.0, %v272
    %v274 = vpop.f32.mrb[0].mxu0
    %275 = vmatprep.mubr.bf16.mxu0 0
    %276 = vmatmul.mubr.bf16.gmra.mrb[0].mxu0 %v122
    %v277 = vpop.f32.mrb[0].mxu0
    %v278 = vadd.f32 0.0, %v277
    %v279 = vpop.f32.mrb[0].mxu0
    %v280 = vpop.f32.mrb[0].mxu0
    %v281 = vadd.f32 0.0, %v280
    %v282 = vpop.f32.mrb[0].mxu0
    %283 = vdwg.mxu0
    %v284 = vadd.f32 %v95, %v222
    %v285 = vadd.f32 %v96, %v225
    %v286 = vadd.f32 %v97, %v230
    %v287 = vadd.f32 %v98, %v233
    %v288 = vadd.f32 %v99, %v238
    %v289 = vadd.f32 %v100, %v241
    %v290 = vadd.f32 %v101, %v246
    %v291 = vadd.f32 %v102, %v249
    %v292 = vadd.f32 %v103, %v254
    %v293 = vadd.f32 %v104, %v257
    %v294 = vadd.f32 %v105, %v262
    %v295 = vadd.f32 %v106, %v265
    %v296 = vadd.f32 %v107, %v270
    %v297 = vadd.f32 %v108, %v273
    %v298 = vadd.f32 %v109, %v278
    %v299 = vadd.f32 %v110, %v281
    %300 = vst [vmem:[#allocation2] sm:$0xff] %v284
    %301 = vst [vmem:[#allocation2 + $0x8] sm:$0xff] %v285
    %302 = vst [vmem:[#allocation2 + $0x10] sm:$0xff] %v286
    %303 = vst [vmem:[#allocation2 + $0x18] sm:$0xff] %v287
    %304 = vst [vmem:[#allocation2 + $0x20] sm:$0xff] %v288
    %305 = vst [vmem:[#allocation2 + $0x28] sm:$0xff] %v289
    %306 = vst [vmem:[#allocation2 + $0x30] sm:$0xff] %v290
    %307 = vst [vmem:[#allocation2 + $0x38] sm:$0xff] %v291
    %308 = vst [vmem:[#allocation2 + $0x40] sm:$0xff] %v292
    %309 = vst [vmem:[#allocation2 + $0x48] sm:$0xff] %v293
    %310 = vst [vmem:[#allocation2 + $0x50] sm:$0xff] %v294
    %311 = vst [vmem:[#allocation2 + $0x58] sm:$0xff] %v295
    %312 = vst [vmem:[#allocation2 + $0x60] sm:$0xff] %v296
    %313 = vst [vmem:[#allocation2 + $0x68] sm:$0xff] %v297
    %314 = vst [vmem:[#allocation2 + $0x70] sm:$0xff] %v298
    %315 = vst [vmem:[#allocation2 + $0x78] sm:$0xff] %v299
    // Predicated region
    $region54: #{tpu_custom_call.1} parent=1 // pred_check
      %p316 = pneg %p75
    $region55: #{tpu_custom_call.1} parent=1 // pred_check_branch
      %318 = sbr.rel (%p316) target = $region57
    $region56: #{tpu_custom_call.1} parent=1 // pred_region
      %v319 = vld [vmem:[#allocation2] sm:$0xff]
      %v320 = vld [vmem:[#allocation2 + $0x8] sm:$0xff]
      %v321 = vld [vmem:[#allocation2 + $0x10] sm:$0xff]
      %v322 = vld [vmem:[#allocation2 + $0x18] sm:$0xff]
      %v323 = vld [vmem:[#allocation2 + $0x20] sm:$0xff]
      %v324 = vld [vmem:[#allocation2 + $0x28] sm:$0xff]
      %v325 = vld [vmem:[#allocation2 + $0x30] sm:$0xff]
      %v326 = vld [vmem:[#allocation2 + $0x38] sm:$0xff]
      %v327 = vld [vmem:[#allocation2 + $0x40] sm:$0xff]
      %v328 = vld [vmem:[#allocation2 + $0x48] sm:$0xff]
      %v329 = vld [vmem:[#allocation2 + $0x50] sm:$0xff]
      %v330 = vld [vmem:[#allocation2 + $0x58] sm:$0xff]
      %v331 = vld [vmem:[#allocation2 + $0x60] sm:$0xff]
      %v332 = vld [vmem:[#allocation2 + $0x68] sm:$0xff]
      %v333 = vld [vmem:[#allocation2 + $0x70] sm:$0xff]
      %v334 = vld [vmem:[#allocation2 + $0x78] sm:$0xff]
      %v335 = vld [vmem:[%s3] sm:$0xff]
      %v336 = vld [vmem:[%s3 + $0x8] sm:$0xff]
      %v337 = vld [vmem:[%s3 + $0x10] sm:$0xff]
      %v338 = vld [vmem:[%s3 + $0x18] sm:$0xff]
      %v339 = vld [vmem:[%s3 + $0x20] sm:$0xff]
      %v340 = vld [vmem:[%s3 + $0x28] sm:$0xff]
      %v341 = vld [vmem:[%s3 + $0x30] sm:$0xff]
      %v342 = vld [vmem:[%s3 + $0x38] sm:$0xff]
      %v343 = vld [vmem:[%s3 + $0x40] sm:$0xff]
      %v344 = vld [vmem:[%s3 + $0x48] sm:$0xff]
      %v345 = vld [vmem:[%s3 + $0x50] sm:$0xff]
      %v346 = vld [vmem:[%s3 + $0x58] sm:$0xff]
      %v347 = vld [vmem:[%s3 + $0x60] sm:$0xff]
      %v348 = vld [vmem:[%s3 + $0x68] sm:$0xff]
      %v349 = vld [vmem:[%s3 + $0x70] sm:$0xff]
      %v350 = vld [vmem:[%s3 + $0x78] sm:$0xff]
      %352 = vset.pattern.permute.xlu0 0
      %353 = vperm.xlu0 %352, %v335
      %v354 = vpop.permute.xlu0 %353
      %357 = vset.pattern.permute.xlu0 0
      %358 = vperm.xlu0 %357, %v336
      %v359 = vpop.permute.xlu0 %358
      %362 = vset.pattern.permute.xlu0 0
      %363 = vperm.xlu0 %362, %v337
      %v364 = vpop.permute.xlu0 %363
      %367 = vset.pattern.permute.xlu0 0
      %368 = vperm.xlu0 %367, %v338
      %v369 = vpop.permute.xlu0 %368
      %372 = vset.pattern.permute.xlu0 0
      %373 = vperm.xlu0 %372, %v339
      %v374 = vpop.permute.xlu0 %373
      %377 = vset.pattern.permute.xlu0 0
      %378 = vperm.xlu0 %377, %v340
      %v379 = vpop.permute.xlu0 %378
      %382 = vset.pattern.permute.xlu0 0
      %383 = vperm.xlu0 %382, %v341
      %v384 = vpop.permute.xlu0 %383
      %387 = vset.pattern.permute.xlu0 0
      %388 = vperm.xlu0 %387, %v342
      %v389 = vpop.permute.xlu0 %388
      %392 = vset.pattern.permute.xlu0 0
      %393 = vperm.xlu0 %392, %v343
      %v394 = vpop.permute.xlu0 %393
      %397 = vset.pattern.permute.xlu0 0
      %398 = vperm.xlu0 %397, %v344
      %v399 = vpop.permute.xlu0 %398
      %402 = vset.pattern.permute.xlu0 0
      %403 = vperm.xlu0 %402, %v345
      %v404 = vpop.permute.xlu0 %403
      %407 = vset.pattern.permute.xlu0 0
      %408 = vperm.xlu0 %407, %v346
      %v409 = vpop.permute.xlu0 %408
      %412 = vset.pattern.permute.xlu0 0
      %413 = vperm.xlu0 %412, %v347
      %v414 = vpop.permute.xlu0 %413
      %417 = vset.pattern.permute.xlu0 0
      %418 = vperm.xlu0 %417, %v348
      %v419 = vpop.permute.xlu0 %418
      %422 = vset.pattern.permute.xlu0 0
      %423 = vperm.xlu0 %422, %v349
      %v424 = vpop.permute.xlu0 %423
      %427 = vset.pattern.permute.xlu0 0
      %428 = vperm.xlu0 %427, %v350
      %v429 = vpop.permute.xlu0 %428
      %v431 = vmul.f32 %v319, %v354
      %v432 = vmul.f32 %v320, %v359
      %v433 = vmul.f32 %v321, %v364
      %v434 = vmul.f32 %v322, %v369
      %v435 = vmul.f32 %v323, %v374
      %v436 = vmul.f32 %v324, %v379
      %v437 = vmul.f32 %v325, %v384
      %v438 = vmul.f32 %v326, %v389
      %v439 = vmul.f32 %v327, %v394
      %v440 = vmul.f32 %v328, %v399
      %v441 = vmul.f32 %v329, %v404
      %v442 = vmul.f32 %v330, %v409
      %v443 = vmul.f32 %v331, %v414
      %v444 = vmul.f32 %v332, %v419
      %v445 = vmul.f32 %v333, %v424
      %v446 = vmul.f32 %v334, %v429
      %v447 = vld [vmem:[%s2] sm:$0xf]
      %v448 = vld [vmem:[%s2 + $0x4] sm:$0xf]
      %v449 = vld [vmem:[%s2 + $0x8] sm:$0xf]
      %v450 = vld [vmem:[%s2 + $0xc] sm:$0xf]
      %v451 = vld [vmem:[%s2 + $0x10] sm:$0xf]
      %v452 = vld [vmem:[%s2 + $0x14] sm:$0xf]
      %v453 = vld [vmem:[%s2 + $0x18] sm:$0xf]
      %v454 = vld [vmem:[%s2 + $0x1c] sm:$0xf]
      %v455 = vld [vmem:[%s2 + $0x20] sm:$0xf]
      %v456 = vld [vmem:[%s2 + $0x24] sm:$0xf]
      %v457 = vld [vmem:[%s2 + $0x28] sm:$0xf]
      %v458 = vld [vmem:[%s2 + $0x2c] sm:$0xf]
      %v459 = vld [vmem:[%s2 + $0x30] sm:$0xf]
      %v460 = vld [vmem:[%s2 + $0x34] sm:$0xf]
      %v461 = vld [vmem:[%s2 + $0x38] sm:$0xf]
      %v462 = vld [vmem:[%s2 + $0x3c] sm:$0xf]
      %v463 = vld [vmem:[#allocation6] sm:$0xf]
      %v464 = vld [vmem:[#allocation6 + $0x4] sm:$0xf]
      %v465 = vld [vmem:[#allocation6 + $0x8] sm:$0xf]
      %v466 = vld [vmem:[#allocation6 + $0xc] sm:$0xf]
      %v467 = vld [vmem:[#allocation6 + $0x10] sm:$0xf]
      %v468 = vld [vmem:[#allocation6 + $0x14] sm:$0xf]
      %v469 = vld [vmem:[#allocation6 + $0x18] sm:$0xf]
      %v470 = vld [vmem:[#allocation6 + $0x1c] sm:$0xf]
      %v471 = vld [vmem:[#allocation6 + $0x20] sm:$0xf]
      %v472 = vld [vmem:[#allocation6 + $0x24] sm:$0xf]
      %v473 = vld [vmem:[#allocation6 + $0x28] sm:$0xf]
      %v474 = vld [vmem:[#allocation6 + $0x2c] sm:$0xf]
      %v475 = vld [vmem:[#allocation6 + $0x30] sm:$0xf]
      %v476 = vld [vmem:[#allocation6 + $0x34] sm:$0xf]
      %v477 = vld [vmem:[#allocation6 + $0x38] sm:$0xf]
      %v478 = vld [vmem:[#allocation6 + $0x3c] sm:$0xf]
      %v479 = vpack.c.bf16 %v432, %v431
      %v480 = vpack.c.bf16 %v434, %v433
      %v481 = vpack.c.bf16 %v436, %v435
      %v482 = vpack.c.bf16 %v438, %v437
      %v483 = vpack.c.bf16 %v440, %v439
      %v484 = vpack.c.bf16 %v442, %v441
      %v485 = vpack.c.bf16 %v444, %v443
      %v486 = vpack.c.bf16 %v446, %v445
      %v487 = vld [vmem:[#allocation8] sm:$0xf]
      %v488 = vld [vmem:[#allocation8 + $0x4] sm:$0xf]
      %v489 = vld [vmem:[#allocation8 + $0x8] sm:$0xf]
      %v490 = vld [vmem:[#allocation8 + $0xc] sm:$0xf]
      %v491 = vld [vmem:[#allocation8 + $0x10] sm:$0xf]
      %v492 = vld [vmem:[#allocation8 + $0x14] sm:$0xf]
      %v493 = vld [vmem:[#allocation8 + $0x18] sm:$0xf]
      %v494 = vld [vmem:[#allocation8 + $0x1c] sm:$0xf]
      %v495 = vld [vmem:[#allocation8 + $0x20] sm:$0xf]
      %v496 = vld [vmem:[#allocation8 + $0x24] sm:$0xf]
      %v497 = vld [vmem:[#allocation8 + $0x28] sm:$0xf]
      %v498 = vld [vmem:[#allocation8 + $0x2c] sm:$0xf]
      %v499 = vld [vmem:[#allocation8 + $0x30] sm:$0xf]
      %v500 = vld [vmem:[#allocation8 + $0x34] sm:$0xf]
      %v501 = vld [vmem:[#allocation8 + $0x38] sm:$0xf]
      %v502 = vld [vmem:[#allocation8 + $0x3c] sm:$0xf]
      %v519 = vunpack.c.l.b16 %v487
      %v520 = vunpack.c.l.b16 %v488
      %v521 = vunpack.c.l.b16 %v489
      %v522 = vunpack.c.l.b16 %v490
      %v523 = vunpack.c.l.b16 %v491
      %v524 = vunpack.c.l.b16 %v492
      %v525 = vunpack.c.l.b16 %v493
      %v526 = vunpack.c.l.b16 %v494
      %v527 = vunpack.c.l.b16 %v495
      %v528 = vunpack.c.l.b16 %v496
      %v529 = vunpack.c.l.b16 %v497
      %v530 = vunpack.c.l.b16 %v498
      %v531 = vunpack.c.l.b16 %v499
      %v532 = vunpack.c.l.b16 %v500
      %v533 = vunpack.c.l.b16 %v501
      %v534 = vunpack.c.l.b16 %v502
      %v535 = vpack.c.b16 %v520, %v519
      %v536 = vpack.c.b16 %v522, %v521
      %v537 = vpack.c.b16 %v524, %v523
      %v538 = vpack.c.b16 %v526, %v525
      %v539 = vpack.c.b16 %v528, %v527
      %v540 = vpack.c.b16 %v530, %v529
      %v541 = vpack.c.b16 %v532, %v531
      %v542 = vpack.c.b16 %v534, %v533
      %551 = vmatprep.subr.bf16.mxu0 0
      %552 = vmatpush1.bf16.msra.mxu0 %v535
      %553 = vmatprep.subr.bf16.mxu0 0
      %554 = vmatpush1.bf16.msra.mxu0 %v536
      %555 = vmatprep.subr.bf16.mxu0 0
      %556 = vmatpush1.bf16.msra.mxu0 %v537
      %557 = vmatprep.subr.bf16.mxu0 0
      %558 = vmatpush1.bf16.msra.mxu0 %v538
      %559 = vmatprep.subr.bf16.mxu0 0
      %560 = vmatpush1.bf16.msra.mxu0 %v539
      %561 = vmatprep.subr.bf16.mxu0 0
      %562 = vmatpush1.bf16.msra.mxu0 %v540
      %563 = vmatprep.subr.bf16.mxu0 0
      %564 = vmatpush1.bf16.msra.mxu0 %v541
      %565 = vmatprep.subr.bf16.mxu0 0
      %566 = vmatpush1.bf16.msra.mxu0 %v542
      %567 = vmatprep.subr.bf16.mxu0 0
      %568 = vmatpush1.bf16.msra.mxu0 0
      %569 = vmatprep.subr.bf16.mxu0 0
      %570 = vmatpush1.bf16.msra.mxu0 0
      %571 = vmatprep.subr.bf16.mxu0 0
      %572 = vmatpush1.bf16.msra.mxu0 0
      %573 = vmatprep.subr.bf16.mxu0 0
      %574 = vmatpush1.bf16.msra.mxu0 0
      %575 = vmatprep.subr.bf16.mxu0 0
      %576 = vmatpush1.bf16.msra.mxu0 0
      %577 = vmatprep.subr.bf16.mxu0 0
      %578 = vmatpush1.bf16.msra.mxu0 0
      %579 = vmatprep.subr.bf16.mxu0 0
      %580 = vmatpush1.bf16.msra.mxu0 0
      %581 = vmatprep.subr.bf16.mxu0 0
      %582 = vmatpush1.bf16.msra.mxu0 0
      %583 = vmatprep.mubr.bf16.mxu0 0
      %584 = vmatmul.mubr.bf16.gmra.mrb[0].mxu0 %v479
      %v585 = vpop.f32.mrb[0].mxu0
      %v586 = vadd.f32 0.0, %v585
      %v587 = vpop.f32.mrb[0].mxu0
      %v588 = vpop.f32.mrb[0].mxu0
      %v589 = vadd.f32 0.0, %v588
      %v590 = vpop.f32.mrb[0].mxu0
      %591 = vmatprep.mubr.bf16.mxu0 0
      %592 = vmatmul.mubr.bf16.gmra.mrb[0].mxu0 %v480
      %v593 = vpop.f32.mrb[0].mxu0
      %v594 = vadd.f32 0.0, %v593
      %v595 = vpop.f32.mrb[0].mxu0
      %v596 = vpop.f32.mrb[0].mxu0
      %v597 = vadd.f32 0.0, %v596
      %v598 = vpop.f32.mrb[0].mxu0
      %599 = vmatprep.mubr.bf16.mxu0 0
      %600 = vmatmul.mubr.bf16.gmra.mrb[0].mxu0 %v481
      %v601 = vpop.f32.mrb[0].mxu0
      %v602 = vadd.f32 0.0, %v601
      %v603 = vpop.f32.mrb[0].mxu0
      %v604 = vpop.f32.mrb[0].mxu0
      %v605 = vadd.f32 0.0, %v604
      %v606 = vpop.f32.mrb[0].mxu0
      %607 = vmatprep.mubr.bf16.mxu0 0
      %608 = vmatmul.mubr.bf16.gmra.mrb[0].mxu0 %v482
      %v609 = vpop.f32.mrb[0].mxu0
      %v610 = vadd.f32 0.0, %v609
      %v611 = vpop.f32.mrb[0].mxu0
      %v612 = vpop.f32.mrb[0].mxu0
      %v613 = vadd.f32 0.0, %v612
      %v614 = vpop.f32.mrb[0].mxu0
      %615 = vmatprep.mubr.bf16.mxu0 0
      %616 = vmatmul.mubr.bf16.gmra.mrb[0].mxu0 %v483
      %v617 = vpop.f32.mrb[0].mxu0
      %v618 = vadd.f32 0.0, %v617
      %v619 = vpop.f32.mrb[0].mxu0
      %v620 = vpop.f32.mrb[0].mxu0
      %v621 = vadd.f32 0.0, %v620
      %v622 = vpop.f32.mrb[0].mxu0
      %623 = vmatprep.mubr.bf16.mxu0 0
      %624 = vmatmul.mubr.bf16.gmra.mrb[0].mxu0 %v484
      %v625 = vpop.f32.mrb[0].mxu0
      %v626 = vadd.f32 0.0, %v625
      %v627 = vpop.f32.mrb[0].mxu0
      %v628 = vpop.f32.mrb[0].mxu0
      %v629 = vadd.f32 0.0, %v628
      %v630 = vpop.f32.mrb[0].mxu0
      %631 = vmatprep.mubr.bf16.mxu0 0
      %632 = vmatmul.mubr.bf16.gmra.mrb[0].mxu0 %v485
      %v633 = vpop.f32.mrb[0].mxu0
      %v634 = vadd.f32 0.0, %v633
      %v635 = vpop.f32.mrb[0].mxu0
      %v636 = vpop.f32.mrb[0].mxu0
      %v637 = vadd.f32 0.0, %v636
      %v638 = vpop.f32.mrb[0].mxu0
      %639 = vmatprep.mubr.bf16.mxu0 0
      %640 = vmatmul.mubr.bf16.gmra.mrb[0].mxu0 %v486
      %v641 = vpop.f32.mrb[0].mxu0
      %v642 = vadd.f32 0.0, %v641
      %v643 = vpop.f32.mrb[0].mxu0
      %v644 = vpop.f32.mrb[0].mxu0
      %v645 = vadd.f32 0.0, %v644
      %v646 = vpop.f32.mrb[0].mxu0
      %647 = vdwg.mxu0
      %v664 = vunpack.c.l.b16 %v447
      %v665 = vunpack.c.l.b16 %v448
      %v666 = vunpack.c.l.b16 %v449
      %v667 = vunpack.c.l.b16 %v450
      %v668 = vunpack.c.l.b16 %v451
      %v669 = vunpack.c.l.b16 %v452
      %v670 = vunpack.c.l.b16 %v453
      %v671 = vunpack.c.l.b16 %v454
      %v672 = vunpack.c.l.b16 %v455
      %v673 = vunpack.c.l.b16 %v456
      %v674 = vunpack.c.l.b16 %v457
      %v675 = vunpack.c.l.b16 %v458
      %v676 = vunpack.c.l.b16 %v459
      %v677 = vunpack.c.l.b16 %v460
      %v678 = vunpack.c.l.b16 %v461
      %v679 = vunpack.c.l.b16 %v462
      %v680 = vpack.c.b16 %v665, %v664
      %v681 = vpack.c.b16 %v667, %v666
      %v682 = vpack.c.b16 %v669, %v668
      %v683 = vpack.c.b16 %v671, %v670
      %v684 = vpack.c.b16 %v673, %v672
      %v685 = vpack.c.b16 %v675, %v674
      %v686 = vpack.c.b16 %v677, %v676
      %v687 = vpack.c.b16 %v679, %v678
      %v712 = vunpack.c.l.b16 %v463
      %v713 = vunpack.c.l.b16 %v464
      %v714 = vunpack.c.l.b16 %v465
      %v715 = vunpack.c.l.b16 %v466
      %v716 = vunpack.c.l.b16 %v467
      %v717 = vunpack.c.l.b16 %v468
      %v718 = vunpack.c.l.b16 %v469
      %v719 = vunpack.c.l.b16 %v470
      %v720 = vunpack.c.l.b16 %v471
      %v721 = vunpack.c.l.b16 %v472
      %v722 = vunpack.c.l.b16 %v473
      %v723 = vunpack.c.l.b16 %v474
      %v724 = vunpack.c.l.b16 %v475
      %v725 = vunpack.c.l.b16 %v476
      %v726 = vunpack.c.l.b16 %v477
      %v727 = vunpack.c.l.b16 %v478
      %v728 = vpack.c.b16 %v713, %v712
      %v729 = vpack.c.b16 %v715, %v714
      %v730 = vpack.c.b16 %v717, %v716
      %v731 = vpack.c.b16 %v719, %v718
      %v732 = vpack.c.b16 %v721, %v720
      %v733 = vpack.c.b16 %v723, %v722
      %v734 = vpack.c.b16 %v725, %v724
      %v735 = vpack.c.b16 %v727, %v726
      %744 = vmatprep.subr.bf16.mxu0 0
      %745 = vmatpush1.bf16.msra.mxu0 %v728
      %746 = vmatprep.subr.bf16.mxu0 0
      %747 = vmatpush1.bf16.msra.mxu0 %v729
      %748 = vmatprep.subr.bf16.mxu0 0
      %749 = vmatpush1.bf16.msra.mxu0 %v730
      %750 = vmatprep.subr.bf16.mxu0 0
      %751 = vmatpush1.bf16.msra.mxu0 %v731
      %752 = vmatprep.subr.bf16.mxu0 0
      %753 = vmatpush1.bf16.msra.mxu0 %v732
      %754 = vmatprep.subr.bf16.mxu0 0
      %755 = vmatpush1.bf16.msra.mxu0 %v733
      %756 = vmatprep.subr.bf16.mxu0 0
      %757 = vmatpush1.bf16.msra.mxu0 %v734
      %758 = vmatprep.subr.bf16.mxu0 0
      %759 = vmatpush1.bf16.msra.mxu0 %v735
      %760 = vmatprep.subr.bf16.mxu0 0
      %761 = vmatpush1.bf16.msra.mxu0 0
      %762 = vmatprep.subr.bf16.mxu0 0
      %763 = vmatpush1.bf16.msra.mxu0 0
      %764 = vmatprep.subr.bf16.mxu0 0
      %765 = vmatpush1.bf16.msra.mxu0 0
      %766 = vmatprep.subr.bf16.mxu0 0
      %767 = vmatpush1.bf16.msra.mxu0 0
      %768 = vmatprep.subr.bf16.mxu0 0
      %769 = vmatpush1.bf16.msra.mxu0 0
      %770 = vmatprep.subr.bf16.mxu0 0
      %771 = vmatpush1.bf16.msra.mxu0 0
      %772 = vmatprep.subr.bf16.mxu0 0
      %773 = vmatpush1.bf16.msra.mxu0 0
      %774 = vmatprep.subr.bf16.mxu0 0
      %775 = vmatpush1.bf16.msra.mxu0 0
      %776 = vmatprep.mubr.bf16.mxu0 0
      %777 = vmatmul.mubr.bf16.gmra.mrb[0].mxu0 %v680
      %v778 = vpop.f32.mrb[0].mxu0
      %v779 = vadd.f32 %v586, %v778
      %v780 = vpop.f32.mrb[0].mxu0
      %v781 = vpop.f32.mrb[0].mxu0
      %v782 = vadd.f32 %v589, %v781
      %v783 = vpop.f32.mrb[0].mxu0
      %784 = vmatprep.mubr.bf16.mxu0 0
      %785 = vmatmul.mubr.bf16.gmra.mrb[0].mxu0 %v681
      %v786 = vpop.f32.mrb[0].mxu0
      %v787 = vadd.f32 %v594, %v786
      %v788 = vpop.f32.mrb[0].mxu0
      %v789 = vpop.f32.mrb[0].mxu0
      %v790 = vadd.f32 %v597, %v789
      %v791 = vpop.f32.mrb[0].mxu0
      %792 = vmatprep.mubr.bf16.mxu0 0
      %793 = vmatmul.mubr.bf16.gmra.mrb[0].mxu0 %v682
      %v794 = vpop.f32.mrb[0].mxu0
      %v795 = vadd.f32 %v602, %v794
      %v796 = vpop.f32.mrb[0].mxu0
      %v797 = vpop.f32.mrb[0].mxu0
      %v798 = vadd.f32 %v605, %v797
      %v799 = vpop.f32.mrb[0].mxu0
      %800 = vmatprep.mubr.bf16.mxu0 0
      %801 = vmatmul.mubr.bf16.gmra.mrb[0].mxu0 %v683
      %v802 = vpop.f32.mrb[0].mxu0
      %v803 = vadd.f32 %v610, %v802
      %v804 = vpop.f32.mrb[0].mxu0
      %v805 = vpop.f32.mrb[0].mxu0
      %v806 = vadd.f32 %v613, %v805
      %v807 = vpop.f32.mrb[0].mxu0
      %808 = vmatprep.mubr.bf16.mxu0 0
      %809 = vmatmul.mubr.bf16.gmra.mrb[0].mxu0 %v684
      %v810 = vpop.f32.mrb[0].mxu0
      %v811 = vadd.f32 %v618, %v810
      %v812 = vpop.f32.mrb[0].mxu0
      %v813 = vpop.f32.mrb[0].mxu0
      %v814 = vadd.f32 %v621, %v813
      %v815 = vpop.f32.mrb[0].mxu0
      %816 = vmatprep.mubr.bf16.mxu0 0
      %817 = vmatmul.mubr.bf16.gmra.mrb[0].mxu0 %v685
      %v818 = vpop.f32.mrb[0].mxu0
      %v819 = vadd.f32 %v626, %v818
      %v820 = vpop.f32.mrb[0].mxu0
      %v821 = vpop.f32.mrb[0].mxu0
      %v822 = vadd.f32 %v629, %v821
      %v823 = vpop.f32.mrb[0].mxu0
      %824 = vmatprep.mubr.bf16.mxu0 0
      %825 = vmatmul.mubr.bf16.gmra.mrb[0].mxu0 %v686
      %v826 = vpop.f32.mrb[0].mxu0
      %v827 = vadd.f32 %v634, %v826
      %v828 = vpop.f32.mrb[0].mxu0
      %v829 = vpop.f32.mrb[0].mxu0
      %v830 = vadd.f32 %v637, %v829
      %v831 = vpop.f32.mrb[0].mxu0
      %832 = vmatprep.mubr.bf16.mxu0 0
      %833 = vmatmul.mubr.bf16.gmra.mrb[0].mxu0 %v687
      %v834 = vpop.f32.mrb[0].mxu0
      %v835 = vadd.f32 %v642, %v834
      %v836 = vpop.f32.mrb[0].mxu0
      %v837 = vpop.f32.mrb[0].mxu0
      %v838 = vadd.f32 %v645, %v837
      %v839 = vpop.f32.mrb[0].mxu0
      %840 = vdwg.mxu0
      %v841 = vld [vmem:[%s6] sm:$0x1]
      %v843 = vlaneseq
      %v844 = vshrl.u32 %v843, 7
      %v845 = vsub.s32 0, %v844
      %v846 = vrot.slane %v841, %v845
      %v848 = vadd.f32 %v779, %v846
      %v849 = vadd.f32 %v782, %v846
      %v850 = vadd.f32 %v787, %v846
      %v851 = vadd.f32 %v790, %v846
      %v852 = vadd.f32 %v795, %v846
      %v853 = vadd.f32 %v798, %v846
      %v854 = vadd.f32 %v803, %v846
      %v855 = vadd.f32 %v806, %v846
      %v856 = vadd.f32 %v811, %v846
      %v857 = vadd.f32 %v814, %v846
      %v858 = vadd.f32 %v819, %v846
      %v859 = vadd.f32 %v822, %v846
      %v860 = vadd.f32 %v827, %v846
      %v861 = vadd.f32 %v830, %v846
      %v862 = vadd.f32 %v835, %v846
      %v863 = vadd.f32 %v838, %v846
      %864 = vadd.xlane.f32.xlu0 %v848
      %v865 = vpop.xlane.xlu0 %864
      %866 = vadd.xlane.f32.xlu0 %v849
      %v867 = vpop.xlane.xlu0 %866
      %868 = vadd.xlane.f32.xlu0 %v850
      %v869 = vpop.xlane.xlu0 %868
      %870 = vadd.xlane.f32.xlu0 %v851
      %v871 = vpop.xlane.xlu0 %870
      %872 = vadd.xlane.f32.xlu0 %v852
      %v873 = vpop.xlane.xlu0 %872
      %874 = vadd.xlane.f32.xlu0 %v853
      %v875 = vpop.xlane.xlu0 %874
      %876 = vadd.xlane.f32.xlu0 %v854
      %v877 = vpop.xlane.xlu0 %876
      %878 = vadd.xlane.f32.xlu0 %v855
      %v879 = vpop.xlane.xlu0 %878
      %880 = vadd.xlane.f32.xlu0 %v856
      %v881 = vpop.xlane.xlu0 %880
      %882 = vadd.xlane.f32.xlu0 %v857
      %v883 = vpop.xlane.xlu0 %882
      %884 = vadd.xlane.f32.xlu0 %v858
      %v885 = vpop.xlane.xlu0 %884
      %886 = vadd.xlane.f32.xlu0 %v859
      %v887 = vpop.xlane.xlu0 %886
      %888 = vadd.xlane.f32.xlu0 %v860
      %v889 = vpop.xlane.xlu0 %888
      %890 = vadd.xlane.f32.xlu0 %v861
      %v891 = vpop.xlane.xlu0 %890
      %892 = vadd.xlane.f32.xlu0 %v862
      %v893 = vpop.xlane.xlu0 %892
      %894 = vadd.xlane.f32.xlu0 %v863
      %v895 = vpop.xlane.xlu0 %894
      %v896 = vmul.f32 %v865, 0.03125
      %v897 = vmul.f32 %v867, 0.03125
      %v898 = vmul.f32 %v869, 0.03125
      %v899 = vmul.f32 %v871, 0.03125
      %v900 = vmul.f32 %v873, 0.03125
      %v901 = vmul.f32 %v875, 0.03125
      %v902 = vmul.f32 %v877, 0.03125
      %v903 = vmul.f32 %v879, 0.03125
      %v904 = vmul.f32 %v881, 0.03125
      %v905 = vmul.f32 %v883, 0.03125
      %v906 = vmul.f32 %v885, 0.03125
      %v907 = vmul.f32 %v887, 0.03125
      %v908 = vmul.f32 %v889, 0.03125
      %v909 = vmul.f32 %v891, 0.03125
      %v910 = vmul.f32 %v893, 0.03125
      %v911 = vmul.f32 %v895, 0.03125
      %v912 = vsub.f32 %v848, %v896
      %v913 = vsub.f32 %v849, %v897
      %v914 = vsub.f32 %v850, %v898
      %v915 = vsub.f32 %v851, %v899
      %v916 = vsub.f32 %v852, %v900
      %v917 = vsub.f32 %v853, %v901
      %v918 = vsub.f32 %v854, %v902
      %v919 = vsub.f32 %v855, %v903
      %v920 = vsub.f32 %v856, %v904
      %v921 = vsub.f32 %v857, %v905
      %v922 = vsub.f32 %v858, %v906
      %v923 = vsub.f32 %v859, %v907
      %v924 = vsub.f32 %v860, %v908
      %v925 = vsub.f32 %v861, %v909
      %v926 = vsub.f32 %v862, %v910
      %v927 = vsub.f32 %v863, %v911
      %v928 = vlaneseq
      %v929 = vand.u32 %v928, 127
      %vm930 = vcmp.lt.s32.totalorder %v929, 32
      %v931 = vsel %vm930, %v912, 0.0
      %v932 = vsel %vm930, %v913, 0.0
      %v933 = vsel %vm930, %v914, 0.0
      %v934 = vsel %vm930, %v915, 0.0
      %v935 = vsel %vm930, %v916, 0.0
      %v936 = vsel %vm930, %v917, 0.0
      %v937 = vsel %vm930, %v918, 0.0
      %v938 = vsel %vm930, %v919, 0.0
      %v939 = vsel %vm930, %v920, 0.0
      %v940 = vsel %vm930, %v921, 0.0
      %v941 = vsel %vm930, %v922, 0.0
      %v942 = vsel %vm930, %v923, 0.0
      %v943 = vsel %vm930, %v924, 0.0
      %v944 = vsel %vm930, %v925, 0.0
      %v945 = vsel %vm930, %v926, 0.0
      %v946 = vsel %vm930, %v927, 0.0
      %v947 = vmul.f32 %v931, %v931
      %v948 = vmul.f32 %v932, %v932
      %v949 = vmul.f32 %v933, %v933
      %v950 = vmul.f32 %v934, %v934
      %v951 = vmul.f32 %v935, %v935
      %v952 = vmul.f32 %v936, %v936
      %v953 = vmul.f32 %v937, %v937
      %v954 = vmul.f32 %v938, %v938
      %v955 = vmul.f32 %v939, %v939
      %v956 = vmul.f32 %v940, %v940
      %v957 = vmul.f32 %v941, %v941
      %v958 = vmul.f32 %v942, %v942
      %v959 = vmul.f32 %v943, %v943
      %v960 = vmul.f32 %v944, %v944
      %v961 = vmul.f32 %v945, %v945
      %v962 = vmul.f32 %v946, %v946
      %963 = vadd.xlane.f32.xlu0 %v947
      %v964 = vpop.xlane.xlu0 %963
      %965 = vadd.xlane.f32.xlu0 %v948
      %v966 = vpop.xlane.xlu0 %965
      %967 = vadd.xlane.f32.xlu0 %v949
      %v968 = vpop.xlane.xlu0 %967
      %969 = vadd.xlane.f32.xlu0 %v950
      %v970 = vpop.xlane.xlu0 %969
      %971 = vadd.xlane.f32.xlu0 %v951
      %v972 = vpop.xlane.xlu0 %971
      %973 = vadd.xlane.f32.xlu0 %v952
      %v974 = vpop.xlane.xlu0 %973
      %975 = vadd.xlane.f32.xlu0 %v953
      %v976 = vpop.xlane.xlu0 %975
      %977 = vadd.xlane.f32.xlu0 %v954
      %v978 = vpop.xlane.xlu0 %977
      %979 = vadd.xlane.f32.xlu0 %v955
      %v980 = vpop.xlane.xlu0 %979
      %981 = vadd.xlane.f32.xlu0 %v956
      %v982 = vpop.xlane.xlu0 %981
      %983 = vadd.xlane.f32.xlu0 %v957
      %v984 = vpop.xlane.xlu0 %983
      %985 = vadd.xlane.f32.xlu0 %v958
      %v986 = vpop.xlane.xlu0 %985
      %987 = vadd.xlane.f32.xlu0 %v959
      %v988 = vpop.xlane.xlu0 %987
      %989 = vadd.xlane.f32.xlu0 %v960
      %v990 = vpop.xlane.xlu0 %989
      %991 = vadd.xlane.f32.xlu0 %v961
      %v992 = vpop.xlane.xlu0 %991
      %993 = vadd.xlane.f32.xlu0 %v962
      %v994 = vpop.xlane.xlu0 %993
      %v995 = vmul.f32 %v964, 0.03125
      %v996 = vmul.f32 %v966, 0.03125
      %v997 = vmul.f32 %v968, 0.03125
      %v998 = vmul.f32 %v970, 0.03125
      %v999 = vmul.f32 %v972, 0.03125
      %v1000 = vmul.f32 %v974, 0.03125
      %v1001 = vmul.f32 %v976, 0.03125
      %v1002 = vmul.f32 %v978, 0.03125
      %v1003 = vmul.f32 %v980, 0.03125
      %v1004 = vmul.f32 %v982, 0.03125
      %v1005 = vmul.f32 %v984, 0.03125
      %v1006 = vmul.f32 %v986, 0.03125
      %v1007 = vmul.f32 %v988, 0.03125
      %v1008 = vmul.f32 %v990, 0.03125
      %v1009 = vmul.f32 %v992, 0.03125
      %v1010 = vmul.f32 %v994, 0.03125
      %v1011 = vadd.f32 %v995, 1e-05
      %v1012 = vadd.f32 %v996, 1e-05
      %v1013 = vadd.f32 %v997, 1e-05
      %v1014 = vadd.f32 %v998, 1e-05
      %v1015 = vadd.f32 %v999, 1e-05
      %v1016 = vadd.f32 %v1000, 1e-05
      %v1017 = vadd.f32 %v1001, 1e-05
      %v1018 = vadd.f32 %v1002, 1e-05
      %v1019 = vadd.f32 %v1003, 1e-05
      %v1020 = vadd.f32 %v1004, 1e-05
      %v1021 = vadd.f32 %v1005, 1e-05
      %v1022 = vadd.f32 %v1006, 1e-05
      %v1023 = vadd.f32 %v1007, 1e-05
      %v1024 = vadd.f32 %v1008, 1e-05
      %v1025 = vadd.f32 %v1009, 1e-05
      %v1026 = vadd.f32 %v1010, 1e-05
      %v1027 = vrsqrt.pop %v1011
      %v1028 = vrsqrt.pop %v1012
      %v1029 = vrsqrt.pop %v1013
      %v1030 = vrsqrt.pop %v1014
      %v1031 = vrsqrt.pop %v1015
      %v1032 = vrsqrt.pop %v1016
      %v1033 = vrsqrt.pop %v1017
      %v1034 = vrsqrt.pop %v1018
      %v1035 = vrsqrt.pop %v1019
      %v1036 = vrsqrt.pop %v1020
      %v1037 = vrsqrt.pop %v1021
      %v1038 = vrsqrt.pop %v1022
      %v1039 = vrsqrt.pop %v1023
      %v1040 = vrsqrt.pop %v1024
      %v1041 = vrsqrt.pop %v1025
      %v1042 = vrsqrt.pop %v1026
      %v1043 = vmul.f32 %v931, %v1027
      %v1044 = vmul.f32 %v932, %v1028
      %v1045 = vmul.f32 %v933, %v1029
      %v1046 = vmul.f32 %v934, %v1030
      %v1047 = vmul.f32 %v935, %v1031
      %v1048 = vmul.f32 %v936, %v1032
      %v1049 = vmul.f32 %v937, %v1033
      %v1050 = vmul.f32 %v938, %v1034
      %v1051 = vmul.f32 %v939, %v1035
      %v1052 = vmul.f32 %v940, %v1036
      %v1053 = vmul.f32 %v941, %v1037
      %v1054 = vmul.f32 %v942, %v1038
      %v1055 = vmul.f32 %v943, %v1039
      %v1056 = vmul.f32 %v944, %v1040
      %v1057 = vmul.f32 %v945, %v1041
      %v1058 = vmul.f32 %v946, %v1042
      %v1059 = vld [vmem:[%s7] sm:$0x1]
      %v1061 = vlaneseq
      %v1062 = vshrl.u32 %v1061, 7
      %v1063 = vsub.s32 0, %v1062
      %v1064 = vrot.slane %v1059, %v1063
      %v1066 = vmul.f32 %v1043, %v1064
      %v1067 = vmul.f32 %v1044, %v1064
      %v1068 = vmul.f32 %v1045, %v1064
      %v1069 = vmul.f32 %v1046, %v1064
      %v1070 = vmul.f32 %v1047, %v1064
      %v1071 = vmul.f32 %v1048, %v1064
      %v1072 = vmul.f32 %v1049, %v1064
      %v1073 = vmul.f32 %v1050, %v1064
      %v1074 = vmul.f32 %v1051, %v1064
      %v1075 = vmul.f32 %v1052, %v1064
      %v1076 = vmul.f32 %v1053, %v1064
      %v1077 = vmul.f32 %v1054, %v1064
      %v1078 = vmul.f32 %v1055, %v1064
      %v1079 = vmul.f32 %v1056, %v1064
      %v1080 = vmul.f32 %v1057, %v1064
      %v1081 = vmul.f32 %v1058, %v1064
      %v1082 = vld [vmem:[%s8] sm:$0x1]
      %v1084 = vlaneseq
      %v1085 = vshrl.u32 %v1084, 7
      %v1086 = vsub.s32 0, %v1085
      %v1087 = vrot.slane %v1082, %v1086
      %v1089 = vadd.f32 %v1066, %v1087
      %v1090 = vadd.f32 %v1067, %v1087
      %v1091 = vadd.f32 %v1068, %v1087
      %v1092 = vadd.f32 %v1069, %v1087
      %v1093 = vadd.f32 %v1070, %v1087
      %v1094 = vadd.f32 %v1071, %v1087
      %v1095 = vadd.f32 %v1072, %v1087
      %v1096 = vadd.f32 %v1073, %v1087
      %v1097 = vadd.f32 %v1074, %v1087
      %v1098 = vadd.f32 %v1075, %v1087
      %v1099 = vadd.f32 %v1076, %v1087
      %v1100 = vadd.f32 %v1077, %v1087
      %v1101 = vadd.f32 %v1078, %v1087
      %v1102 = vadd.f32 %v1079, %v1087
      %v1103 = vadd.f32 %v1080, %v1087
      %v1104 = vadd.f32 %v1081, %v1087
      %v1105 = vmax.f32 %v1089, 0.0
      %v1106 = vmax.f32 %v1090, 0.0
      %v1107 = vmax.f32 %v1091, 0.0
      %v1108 = vmax.f32 %v1092, 0.0
      %v1109 = vmax.f32 %v1093, 0.0
      %v1110 = vmax.f32 %v1094, 0.0
      %v1111 = vmax.f32 %v1095, 0.0
      %v1112 = vmax.f32 %v1096, 0.0
      %v1113 = vmax.f32 %v1097, 0.0
      %v1114 = vmax.f32 %v1098, 0.0
      %v1115 = vmax.f32 %v1099, 0.0
      %v1116 = vmax.f32 %v1100, 0.0
      %v1117 = vmax.f32 %v1101, 0.0
      %v1118 = vmax.f32 %v1102, 0.0
      %v1119 = vmax.f32 %v1103, 0.0
      %v1120 = vmax.f32 %v1104, 0.0
      %v1121 = vpack.c.bf16 %v1106, %v1105
      %v1122 = vpack.c.bf16 %v1108, %v1107
      %v1123 = vpack.c.bf16 %v1110, %v1109
      %v1124 = vpack.c.bf16 %v1112, %v1111
      %v1125 = vpack.c.bf16 %v1114, %v1113
      %v1126 = vpack.c.bf16 %v1116, %v1115
      %v1127 = vpack.c.bf16 %v1118, %v1117
      %v1128 = vpack.c.bf16 %v1120, %v1119
      %v1137 = vunpack.c.l.b16 %v1121
      %v1138 = vunpack.c.h.b16 %v1121
      %v1139 = vunpack.c.l.b16 %v1122
      %v1140 = vunpack.c.h.b16 %v1122
      %v1141 = vunpack.c.l.b16 %v1123
      %v1142 = vunpack.c.h.b16 %v1123
      %v1143 = vunpack.c.l.b16 %v1124
      %v1144 = vunpack.c.h.b16 %v1124
      %v1145 = vunpack.c.l.b16 %v1125
      %v1146 = vunpack.c.h.b16 %v1125
      %v1147 = vunpack.c.l.b16 %v1126
      %v1148 = vunpack.c.h.b16 %v1126
      %v1149 = vunpack.c.l.b16 %v1127
      %v1150 = vunpack.c.h.b16 %v1127
      %v1151 = vunpack.c.l.b16 %v1128
      %v1152 = vunpack.c.h.b16 %v1128
      %v1153 = vpack.c.b16 %v1137, %v1137
      %v1154 = vpack.c.b16 %v1138, %v1138
      %v1155 = vpack.c.b16 %v1139, %v1139
      %v1156 = vpack.c.b16 %v1140, %v1140
      %v1157 = vpack.c.b16 %v1141, %v1141
      %v1158 = vpack.c.b16 %v1142, %v1142
      %v1159 = vpack.c.b16 %v1143, %v1143
      %v1160 = vpack.c.b16 %v1144, %v1144
      %v1161 = vpack.c.b16 %v1145, %v1145
      %v1162 = vpack.c.b16 %v1146, %v1146
      %v1163 = vpack.c.b16 %v1147, %v1147
      %v1164 = vpack.c.b16 %v1148, %v1148
      %v1165 = vpack.c.b16 %v1149, %v1149
      %v1166 = vpack.c.b16 %v1150, %v1150
      %v1167 = vpack.c.b16 %v1151, %v1151
      %v1168 = vpack.c.b16 %v1152, %v1152
      %1185 = vst [vmem:[#allocation9] sm:$0xf] %v1153
      %1186 = vst [vmem:[#allocation9 + $0x4] sm:$0xf] %v1154
      %1187 = vst [vmem:[#allocation9 + $0x8] sm:$0xf] %v1155
      %1188 = vst [vmem:[#allocation9 + $0xc] sm:$0xf] %v1156
      %1189 = vst [vmem:[#allocation9 + $0x10] sm:$0xf] %v1157
      %1190 = vst [vmem:[#allocation9 + $0x14] sm:$0xf] %v1158
      %1191 = vst [vmem:[#allocation9 + $0x18] sm:$0xf] %v1159
      %1192 = vst [vmem:[#allocation9 + $0x1c] sm:$0xf] %v1160
      %1193 = vst [vmem:[#allocation9 + $0x20] sm:$0xf] %v1161
      %1194 = vst [vmem:[#allocation9 + $0x24] sm:$0xf] %v1162
      %1195 = vst [vmem:[#allocation9 + $0x28] sm:$0xf] %v1163
      %1196 = vst [vmem:[#allocation9 + $0x2c] sm:$0xf] %v1164
      %1197 = vst [vmem:[#allocation9 + $0x30] sm:$0xf] %v1165
      %1198 = vst [vmem:[#allocation9 + $0x34] sm:$0xf] %v1166
      %1199 = vst [vmem:[#allocation9 + $0x38] sm:$0xf] %v1167
      %1200 = vst [vmem:[#allocation9 + $0x3c] sm:$0xf] %v1168
    $region57: #{tpu_custom_call.1} parent=1 // pred_fallthru
      _
    // Predicated region
    $region58: #{tpu_custom_call.1} parent=1 // pred_check
      _
    $region59: #{tpu_custom_call.1} parent=1 // pred_check_branch
      %1202 = sbr.rel (0) target = $region61
    $region60: #{tpu_custom_call.1} parent=1 // pred_region
      %s1204 = ssub.s32 1024, 1024
      %1205 = vsyncadd [#allocation5], %s1204
      %s1206 = sshll.u32 [#allocation9], 4
      %s1207 = int_to_ptr.vmem [resolvable:$true] %s1206
      %1212 = dma.vmem_to_hbm [thread:$0]  %s1207, 1024, %s9, [#allocation5], 64, 64, 4
    $region61: #{tpu_custom_call.1} parent=1 // pred_fallthru
      _
    // Predicated region
    $region62: #{tpu_custom_call.1} parent=1 // pred_check
      _
    $region63: #{tpu_custom_call.1} parent=1 // pred_check_branch
      %1214 = sbr.rel (0) target = $region65
    $region64: #{tpu_custom_call.1} parent=1 // pred_region
      %1215 = dma.done [#allocation5], 1024
    $region65: #{tpu_custom_call.1} parent=1 // pred_fallthru
      _
    %1216 = vsyncpa [#allocation4], 1
    %1217 = vsyncpa [#allocation7], 1
    %1218 = vsyncpa [#allocation5], 1

</llo_original>
